<compile_context>
chip_gen: v6e
topology: v6e:2x2x1
jax: 0.10.0
libtpu: 0.0.40
codegen_flags: <defaults>
</compile_context>

<pallas_src>
import functools

import jax
import jax.numpy as jnp
from jax.experimental import pallas as pl
from jax.experimental.pallas import tpu as pltpu


def _round_up(x: int, m: int) -> int:
    return (x + m - 1) // m * m


def _largest_aligned_divisor(total: int, limit: int, align: int = 128) -> int:
    """Largest multiple of `align` that divides `total` and is <= limit (>=align)."""
    limit = max(align, min(total, (limit // align) * align))
    c = limit
    while c > align and total % c != 0:
        c -= align
    return c


def _device_info():
    kind = ""
    try:
        kind = jax.devices()[0].device_kind.lower()
    except Exception:
        pass
    vmem = None
    try:
        vmem = int(pltpu.get_tpu_info().vmem_capacity_bytes)
    except Exception:
        vmem = None
    if not vmem or vmem <= 0:
        vmem = (64 << 20) if "v7" in kind else (128 << 20)
    return kind, vmem


# --------------------------------------------------------------------------
# Kernel
# --------------------------------------------------------------------------
def _epilogue(h, p_ref, o_ref, *, activation, use_layernorm, eps, n_valid,
              gelu_approximate):
    p = p_ref[...].astype(jnp.float32)         # (8, tn): row0=bias,1=gamma,2=beta
    h = h + p[0:1, :]

    if activation == "relu":
        h = jnp.maximum(h, 0.0)
    elif activation == "gelu":
        # torch.nn.GELU default is the exact erf form; tanh approx is opt-in.
        h = jax.nn.gelu(h, approximate=gelu_approximate)
    # "none" -> identity

    if use_layernorm:
        n_pad = h.shape[-1]
        inv_n = jnp.float32(1.0 / n_valid)
        # Padded feature lanes are exactly zero before centering (zero weight
        # columns, zero bias, act(0)=0), so full-lane sums need no iota mask:
        mean = jnp.sum(h, axis=-1, keepdims=True) * inv_n
        centered = h - mean
        ssq = jnp.sum(centered * centered, axis=-1, keepdims=True)
        if n_pad != n_valid:
            # each padded lane contributes mean^2 to the centered sum of squares
            ssq = ssq - jnp.float32(n_pad - n_valid) * (mean * mean)
        var = ssq * inv_n
        h = centered * jax.lax.rsqrt(var + jnp.float32(eps))
        h = h * p[1:2, :] + p[2:3, :]

    o_ref[...] = h.astype(o_ref.dtype)


def _nonlinear_kernel(x_ref, w_ref, p_ref, o_ref, *scratch, activation,
                      use_layernorm, eps, n_valid, multi_k, gelu_approximate):
    finish = functools.partial(
        _epilogue, p_ref=p_ref, o_ref=o_ref, activation=activation,
        use_layernorm=use_layernorm, eps=eps, n_valid=n_valid,
        gelu_approximate=gelu_approximate)

    if multi_k:
        acc_ref, = scratch
        k = pl.program_id(2)

        @pl.when(k == 0)
        def _():
            acc_ref[...] = jnp.zeros_like(acc_ref)

        acc_ref[...] += jnp.dot(x_ref[...], w_ref[...],
                                preferred_element_type=jnp.float32)

        @pl.when(k == pl.num_programs(2) - 1)
        def _():
            finish(acc_ref[...])
    else:
        finish(jnp.dot(x_ref[...], w_ref[...],
                       preferred_element_type=jnp.float32))


# --------------------------------------------------------------------------
# Parameter packing (hoisted out of the forward path)
# --------------------------------------------------------------------------
def pack_nonlinear_params(weight, bias, gamma=None, beta=None):
    """Pad/transpose nn.Linear parameters once.

    weight: [N, K] (PyTorch nn.Linear layout), bias/gamma/beta: [N].
    Returns (w_packed [K_pad, N_pad], params_packed [8, N_pad], (K, N)).
    params_packed rows: 0=bias, 1=gamma (ones if absent), 2=beta (zeros).
    """
    N, K = weight.shape
    K_pad = _round_up(K, 128)
    N_pad = _round_up(N, 128)
    w_p = jnp.zeros((K_pad, N_pad), weight.dtype).at[:K, :N].set(weight.T)
    params = jnp.zeros((8, N_pad), jnp.float32)
    params = params.at[0, :N].set(bias.astype(jnp.float32))
    if gamma is not None:
        params = params.at[1, :N].set(gamma.astype(jnp.float32))
    if beta is not None:
        params = params.at[2, :N].set(beta.astype(jnp.float32))
    return w_p, params, (K, N)


# --------------------------------------------------------------------------
# Forward
# --------------------------------------------------------------------------
def nonlinear_forward(x, w_packed, params_packed, dims, *,
                      activation="relu", use_layernorm=False, eps=1e-6,
                      tile_m=None, gelu_approximate=False):
    """Fused Linear -> activation -> (optional) LayerNorm on pre-packed params."""
    assert activation in ("relu", "gelu", "none")
    K, N = dims
    K_pad, N_pad = w_packed.shape
    orig_shape = x.shape
    assert orig_shape[-1] == K, "x last dim must equal in_features"

    x2 = x.reshape(-1, K)
    M = x2.shape[0]
    dt = x2.dtype
    x_it = dt.itemsize
    w_it = w_packed.dtype.itemsize
    p_it = params_packed.dtype.itemsize

    kind, vmem_phys = _device_info()

    # ---- row tile (M) ----------------------------------------------------
    small_weight = K_pad * N_pad * w_it <= (4 << 20)
    if "v5e" in kind or "v5 lite" in kind or "v5lite" in kind:
        tm_default = 128                       # 4x128 MXU: 128 rows fills it
    elif "v7" in kind and small_weight:
        tm_default = 512                       # mem-bound on v7x: bigger tiles
    else:
        tm_default = 256
    tm = tile_m if tile_m is not None else tm_default
    tm = min(tm, _round_up(M, 8))
    if "v7" in kind and M >= 256 and _round_up(M, tm) // tm < 2:
        tm = _round_up(-(-M // 2), 8)          # give both TensorCores work
    M_pad = _round_up(M, tm)
    grid_m = M_pad // tm

    # ---- feature tile (N) --------------------------------------------------
    if use_layernorm:
        tn = N_pad                              # LN needs the whole row resident
    else:
        tn = N_pad if N_pad <= 1024 else _largest_aligned_divisor(N_pad, 512)
    grid_n = N_pad // tn

    # ---- contraction tile (K) ----------------------------------------------
    weight_budget = max(128 * tn * w_it, vmem_phys // 4)
    if K_pad * tn * w_it <= weight_budget:
        tk = K_pad                              # whole contraction resident
    else:
        tk = _largest_aligned_divisor(K_pad, weight_budget // (2 * tn * w_it))
    grid_k = K_pad // tk
    multi_k = grid_k > 1

    # ---- pad activations only when needed ----------------------------------
    if M_pad == M and K_pad == K:
        x_p = x2
    else:
        x_p = jnp.zeros((M_pad, K_pad), dt).at[:M, :K].set(x2)

    kernel = functools.partial(
        _nonlinear_kernel, activation=activation, use_layernorm=use_layernorm,
        eps=eps, n_valid=N, multi_k=multi_k, gelu_approximate=gelu_approximate)

    def _run(use_single_buffer):
        w_mode = {}
        if use_single_buffer and grid_k == 1 and grid_n == 1:
            w_mode = dict(pipeline_mode=pl.Buffered(1))   # constant index map
        p_mode = {}
        if use_single_buffer and grid_n == 1:
            p_mode = dict(pipeline_mode=pl.Buffered(1))

        in_specs = [
            pl.BlockSpec((tm, tk), lambda i, j, k: (i, k)),          # x tile
            pl.BlockSpec((tk, tn), lambda i, j, k: (k, j), **w_mode),  # weight
            pl.BlockSpec((8, tn), lambda i, j, k: (0, j), **p_mode),   # bias/ln
        ]
        out_spec = pl.BlockSpec((tm, tn), lambda i, j, k: (i, j))
        scratch = [pltpu.VMEM((tm, tn), jnp.float32)] if multi_k else []

        w_bufs = 1 if w_mode else 2
        p_bufs = 1 if p_mode else 2
        vmem_est = (2 * tm * tk * x_it + w_bufs * tk * tn * w_it
                    + p_bufs * 8 * tn * p_it + 2 * tm * tn * x_it
                    + (tm * tn * 4 if multi_k else 0))
        vmem_limit = int(min(vmem_phys * 3 // 4,
                             max(vmem_est * 5 // 4 + (2 << 20), 16 << 20)))

        w_reads = 1 if (grid_k == 1 and grid_n == 1) else grid_m
        cost = pl.CostEstimate(
            flops=2 * M_pad * K_pad * N_pad,
            transcendentals=(M_pad * N_pad if activation == "gelu" else 0)
                            + (M_pad if use_layernorm else 0),
            bytes_accessed=(x_it * M_pad * K_pad
                            + w_it * K_pad * N_pad * w_reads
                            + p_it * 8 * N_pad
                            + x_it * M_pad * N_pad),
        )

        return pl.pallas_call(
            kernel,
            out_shape=jax.ShapeDtypeStruct((M_pad, N_pad), dt),
            grid_spec=pltpu.PrefetchScalarGridSpec(
                num_scalar_prefetch=0,
                grid=(grid_m, grid_n, grid_k),
                in_specs=in_specs,
                out_specs=out_spec,
                scratch_shapes=scratch),
            compiler_params=pltpu.CompilerParams(
                dimension_semantics=("parallel", "parallel", "arbitrary"),
                vmem_limit_bytes=vmem_limit),
            cost_estimate=cost,
        )(x_p, w_packed, params_packed)

    try:
        out = _run(True)
    except Exception:
        # Fallback for jax versions that reject pipeline_mode / Buffered(1):
        # identical kernel with default double-buffered BlockSpecs.
        out = _run(False)

    if M_pad != M or N_pad != N:
        out = out[:M, :N]
    return out.reshape(*orig_shape[:-1], N)


def nonlinear_apply(x, weight, bias, gamma=None, beta=None, **kwargs):
    """One-shot convenience wrapper (packs params, then runs the kernel)."""
    w_p, params, dims = pack_nonlinear_params(weight, bias, gamma, beta)
    return nonlinear_forward(x, w_p, params, dims, **kwargs)


# --------------------------------------------------------------------------
# Self-test
# --------------------------------------------------------------------------
if __name__ == "__main__":
    # NonLinear(32, 32) applied to [batch=2, seq=8, in_features=32].
    in_features = 32
    out_features = 32
    batch, seq = 2, 8

    key = jax.random.PRNGKey(0)
    kx, kw, kb = jax.random.split(key, 3)

    x = jax.random.normal(kx, (batch, seq, in_features), dtype=jnp.float32)

    # nn.Linear-style init: uniform(-1/sqrt(K), 1/sqrt(K)).
    bound = 1.0 / (in_features ** 0.5)
    w = jax.random.uniform(kw, (out_features, in_features),
                           minval=-bound, maxval=bound, dtype=jnp.float32)
    b = jax.random.uniform(kb, (out_features,),
                           minval=-bound, maxval=bound, dtype=jnp.float32)
    gamma = jnp.ones((out_features,), dtype=jnp.float32)   # nn.LayerNorm affine init
    beta = jnp.zeros((out_features,), dtype=jnp.float32)

    def reference(xv, activation, use_layernorm, eps=1e-6):
        h = xv @ w.T + b
        if activation == "relu":
            h = jnp.maximum(h, 0.0)
        elif activation == "gelu":
            h = jax.nn.gelu(h, approximate=False)
        if use_layernorm:
            mean = jnp.mean(h, axis=-1, keepdims=True)
            var = jnp.mean((h - mean) ** 2, axis=-1, keepdims=True)
            h = (h - mean) * jax.lax.rsqrt(var + eps) * gamma + beta
        return h

    # Pack weights once (hoists the transpose / pad out of the forward path).
    w_p, params, dims = pack_nonlinear_params(w, b, gamma, beta)

    # Config 1: relu + LayerNorm (padded-lane-corrected LN statistics).
    out1 = nonlinear_forward(x, w_p, params, dims,
                             activation="relu", use_layernorm=True)
    out1 = jax.block_until_ready(out1)
    ref1 = reference(x, "relu", True)
    assert out1.shape == ref1.shape
    assert jnp.allclose(out1, ref1, atol=1e-5, rtol=1e-5), "relu+LN mismatch"

    # Config 2: identity activation, no LayerNorm.
    out2 = nonlinear_forward(x, w_p, params, dims,
                             activation="none", use_layernorm=False)
    out2 = jax.block_until_ready(out2)
    ref2 = reference(x, "none", False)
    assert out2.shape == ref2.shape
    assert jnp.allclose(out2, ref2, atol=1e-5, rtol=1e-5), "identity mismatch"

    print("KERNEL_OK")
</pallas_src>

<mosaic_0001>
module attributes {stable_mosaic.version = 11 : i64} {
  func.func @_nonlinear_kernel(%arg0: i32, %arg1: i32, %arg2: i32, %arg3: memref<16x128xf32, #tpu.memory_space<vmem>>, %arg4: memref<128x128xf32, #tpu.memory_space<vmem>>, %arg5: memref<8x128xf32, #tpu.memory_space<vmem>>, %arg6: memref<16x128xf32, #tpu.memory_space<vmem>>) attributes {dimension_semantics = [#tpu.dimension_semantics<parallel>, #tpu.dimension_semantics<parallel>, #tpu.dimension_semantics<arbitrary>], iteration_bounds = array<i64: 1, 1, 1>, scalar_prefetch = 0 : i64, scratch_operands = 0 : i64, tpu.core_type = #tpu.core_type<tc>, window_params = [{transform_indices = @transform_0, window_bounds = array<i64: 16, 128>}, {pipeline_mode = #tpu.pipeline_mode<synchronous>, transform_indices = @transform_1, window_bounds = array<i64: 128, 128>}, {pipeline_mode = #tpu.pipeline_mode<synchronous>, transform_indices = @transform_2, window_bounds = array<i64: 8, 128>}, {transform_indices = @transform_3, window_bounds = array<i64: 16, 128>}]} {
    %c0 = arith.constant 0 : index
    %c0_0 = arith.constant 0 : index
    %0 = vector.load %arg3[%c0, %c0_0] : memref<16x128xf32, #tpu.memory_space<vmem>>, vector<16x128xf32>
    %c0_1 = arith.constant 0 : index
    %c0_2 = arith.constant 0 : index
    %1 = vector.load %arg4[%c0_1, %c0_2] : memref<128x128xf32, #tpu.memory_space<vmem>>, vector<128x128xf32>
    %cst = arith.constant dense<0.000000e+00> : vector<16x128xf32>
    %2 = tpu.matmul %0, %1, %cst {dimension_numbers = #tpu.dot_dimension_numbers<[1], [0], [0], [1], [0, 0, 1, 1], [], []>} : vector<16x128xf32>, vector<128x128xf32>, vector<16x128xf32> -> vector<16x128xf32>
    %c0_3 = arith.constant 0 : index
    %c0_4 = arith.constant 0 : index
    %3 = vector.load %arg5[%c0_3, %c0_4] : memref<8x128xf32, #tpu.memory_space<vmem>>, vector<8x128xf32>
    %4 = vector.extract_strided_slice %3 {offsets = [0, 0], sizes = [1, 128], strides = [1, 1]} : vector<8x128xf32> to vector<1x128xf32>
    %5 = vector.broadcast %4 : vector<1x128xf32> to vector<16x128xf32>
    %6 = arith.addf %2, %5 : vector<16x128xf32>
    %cst_5 = arith.constant 0.000000e+00 : f32
    %7 = vector.broadcast %cst_5 : f32 to vector<16x128xf32>
    %8 = arith.maximumf %6, %7 : vector<16x128xf32>
    %cst_6 = arith.constant dense<0.000000e+00> : vector<16xf32>
    %9 = vector.multi_reduction <add>, %8, %cst_6 [1] : vector<16x128xf32> to vector<16xf32>
    %10 = vector.shape_cast %9 : vector<16xf32> to vector<16x1xf32>
    %cst_7 = arith.constant 3.125000e-02 : f32
    %11 = vector.broadcast %cst_7 : f32 to vector<16x1xf32>
    %12 = arith.mulf %10, %11 : vector<16x1xf32>
    %13 = vector.broadcast %12 : vector<16x1xf32> to vector<16x128xf32>
    %14 = arith.subf %8, %13 : vector<16x128xf32>
    %15 = arith.mulf %14, %14 : vector<16x128xf32>
    %cst_8 = arith.constant dense<0.000000e+00> : vector<16xf32>
    %16 = vector.multi_reduction <add>, %15, %cst_8 [1] : vector<16x128xf32> to vector<16xf32>
    %17 = vector.shape_cast %16 : vector<16xf32> to vector<16x1xf32>
    %18 = arith.mulf %12, %12 : vector<16x1xf32>
    %cst_9 = arith.constant 9.600000e+01 : f32
    %19 = vector.broadcast %cst_9 : f32 to vector<16x1xf32>
    %20 = arith.mulf %19, %18 : vector<16x1xf32>
    %21 = arith.subf %17, %20 : vector<16x1xf32>
    %cst_10 = arith.constant 3.125000e-02 : f32
    %22 = vector.broadcast %cst_10 : f32 to vector<16x1xf32>
    %23 = arith.mulf %21, %22 : vector<16x1xf32>
    %cst_11 = arith.constant 9.99999997E-7 : f32
    %24 = vector.broadcast %cst_11 : f32 to vector<16x1xf32>
    %25 = arith.addf %23, %24 : vector<16x1xf32>
    %26 = math.rsqrt %25 : vector<16x1xf32>
    %27 = vector.broadcast %26 : vector<16x1xf32> to vector<16x128xf32>
    %28 = arith.mulf %14, %27 : vector<16x128xf32>
    %29 = vector.extract_strided_slice %3 {offsets = [1, 0], sizes = [1, 128], strides = [1, 1]} : vector<8x128xf32> to vector<1x128xf32>
    %30 = vector.broadcast %29 : vector<1x128xf32> to vector<16x128xf32>
    %31 = arith.mulf %28, %30 : vector<16x128xf32>
    %32 = vector.extract_strided_slice %3 {offsets = [2, 0], sizes = [1, 128], strides = [1, 1]} : vector<8x128xf32> to vector<1x128xf32>
    %33 = vector.broadcast %32 : vector<1x128xf32> to vector<16x128xf32>
    %34 = arith.addf %31, %33 : vector<16x128xf32>
    %c0_12 = arith.constant 0 : index
    %c0_13 = arith.constant 0 : index
    %35 = vector.load %arg6[%c0_12, %c0_13] : memref<16x128xf32, #tpu.memory_space<vmem>>, vector<16x128xf32>
    tpu.vector_store %arg6[%c0_12, %c0_13], %34 {strides = array<i32>} : memref<16x128xf32, #tpu.memory_space<vmem>>, vector<16x128xf32>,
    return
  }
  func.func @transform_0(%arg0: i32, %arg1: i32, %arg2: i32) -> (i32, i32) {
    %c0_i32 = arith.constant 0 : i32
    return %arg0, %arg2 : i32, i32
  }
  func.func @transform_1(%arg0: i32, %arg1: i32, %arg2: i32) -> (i32, i32) {
    %c0_i32 = arith.constant 0 : i32
    return %arg2, %arg1 : i32, i32
  }
  func.func @transform_2(%arg0: i32, %arg1: i32, %arg2: i32) -> (i32, i32) {
    %c0_i32 = arith.constant 0 : i32
    %c0_i32_0 = arith.constant 0 : i32
    return %c0_i32, %arg1 : i32, i32
  }
  func.func @transform_3(%arg0: i32, %arg1: i32, %arg2: i32) -> (i32, i32) {
    %c0_i32 = arith.constant 0 : i32
    return %arg0, %arg1 : i32, i32
  }
}

module attributes {stable_mosaic.version = 11 : i64} {
  func.func @_nonlinear_kernel(%arg0: i32, %arg1: i32, %arg2: i32, %arg3: memref<16x128xf32, #tpu.memory_space<vmem>>, %arg4: memref<128x128xf32, #tpu.memory_space<vmem>>, %arg5: memref<8x128xf32, #tpu.memory_space<vmem>>, %arg6: memref<16x128xf32, #tpu.memory_space<vmem>>) attributes {dimension_semantics = [#tpu.dimension_semantics<parallel>, #tpu.dimension_semantics<parallel>, #tpu.dimension_semantics<arbitrary>], iteration_bounds = array<i64: 1, 1, 1>, scalar_prefetch = 0 : i64, scratch_operands = 0 : i64, tpu.core_type = #tpu.core_type<tc>, window_params = [{transform_indices = @transform_0, window_bounds = array<i64: 16, 128>}, {transform_indices = @transform_1, window_bounds = array<i64: 128, 128>}, {transform_indices = @transform_2, window_bounds = array<i64: 8, 128>}, {transform_indices = @transform_3, window_bounds = array<i64: 16, 128>}]} {
    %c0 = arith.constant 0 : index
    %c0_0 = arith.constant 0 : index
    %0 = vector.load %arg3[%c0, %c0_0] : memref<16x128xf32, #tpu.memory_space<vmem>>, vector<16x128xf32>
    %c0_1 = arith.constant 0 : index
    %c0_2 = arith.constant 0 : index
    %1 = vector.load %arg4[%c0_1, %c0_2] : memref<128x128xf32, #tpu.memory_space<vmem>>, vector<128x128xf32>
    %cst = arith.constant dense<0.000000e+00> : vector<16x128xf32>
    %2 = tpu.matmul %0, %1, %cst {dimension_numbers = #tpu.dot_dimension_numbers<[1], [0], [0], [1], [0, 0, 1, 1], [], []>} : vector<16x128xf32>, vector<128x128xf32>, vector<16x128xf32> -> vector<16x128xf32>
    %c0_3 = arith.constant 0 : index
    %c0_4 = arith.constant 0 : index
    %3 = vector.load %arg5[%c0_3, %c0_4] : memref<8x128xf32, #tpu.memory_space<vmem>>, vector<8x128xf32>
    %4 = vector.extract_strided_slice %3 {offsets = [0, 0], sizes = [1, 128], strides = [1, 1]} : vector<8x128xf32> to vector<1x128xf32>
    %5 = vector.broadcast %4 : vector<1x128xf32> to vector<16x128xf32>
    %6 = arith.addf %2, %5 : vector<16x128xf32>
    %cst_5 = arith.constant 0.000000e+00 : f32
    %7 = vector.broadcast %cst_5 : f32 to vector<16x128xf32>
    %8 = arith.maximumf %6, %7 : vector<16x128xf32>
    %cst_6 = arith.constant dense<0.000000e+00> : vector<16xf32>
    %9 = vector.multi_reduction <add>, %8, %cst_6 [1] : vector<16x128xf32> to vector<16xf32>
    %10 = vector.shape_cast %9 : vector<16xf32> to vector<16x1xf32>
    %cst_7 = arith.constant 3.125000e-02 : f32
    %11 = vector.broadcast %cst_7 : f32 to vector<16x1xf32>
    %12 = arith.mulf %10, %11 : vector<16x1xf32>
    %13 = vector.broadcast %12 : vector<16x1xf32> to vector<16x128xf32>
    %14 = arith.subf %8, %13 : vector<16x128xf32>
    %15 = arith.mulf %14, %14 : vector<16x128xf32>
    %cst_8 = arith.constant dense<0.000000e+00> : vector<16xf32>
    %16 = vector.multi_reduction <add>, %15, %cst_8 [1] : vector<16x128xf32> to vector<16xf32>
    %17 = vector.shape_cast %16 : vector<16xf32> to vector<16x1xf32>
    %18 = arith.mulf %12, %12 : vector<16x1xf32>
    %cst_9 = arith.constant 9.600000e+01 : f32
    %19 = vector.broadcast %cst_9 : f32 to vector<16x1xf32>
    %20 = arith.mulf %19, %18 : vector<16x1xf32>
    %21 = arith.subf %17, %20 : vector<16x1xf32>
    %cst_10 = arith.constant 3.125000e-02 : f32
    %22 = vector.broadcast %cst_10 : f32 to vector<16x1xf32>
    %23 = arith.mulf %21, %22 : vector<16x1xf32>
    %cst_11 = arith.constant 9.99999997E-7 : f32
    %24 = vector.broadcast %cst_11 : f32 to vector<16x1xf32>
    %25 = arith.addf %23, %24 : vector<16x1xf32>
    %26 = math.rsqrt %25 : vector<16x1xf32>
    %27 = vector.broadcast %26 : vector<16x1xf32> to vector<16x128xf32>
    %28 = arith.mulf %14, %27 : vector<16x128xf32>
    %29 = vector.extract_strided_slice %3 {offsets = [1, 0], sizes = [1, 128], strides = [1, 1]} : vector<8x128xf32> to vector<1x128xf32>
    %30 = vector.broadcast %29 : vector<1x128xf32> to vector<16x128xf32>
    %31 = arith.mulf %28, %30 : vector<16x128xf32>
    %32 = vector.extract_strided_slice %3 {offsets = [2, 0], sizes = [1, 128], strides = [1, 1]} : vector<8x128xf32> to vector<1x128xf32>
    %33 = vector.broadcast %32 : vector<1x128xf32> to vector<16x128xf32>
    %34 = arith.addf %31, %33 : vector<16x128xf32>
    %c0_12 = arith.constant 0 : index
    %c0_13 = arith.constant 0 : index
    %35 = vector.load %arg6[%c0_12, %c0_13] : memref<16x128xf32, #tpu.memory_space<vmem>>, vector<16x128xf32>
    tpu.vector_store %arg6[%c0_12, %c0_13], %34 {strides = array<i32>} : memref<16x128xf32, #tpu.memory_space<vmem>>, vector<16x128xf32>,
    return
  }
  func.func @transform_0(%arg0: i32, %arg1: i32, %arg2: i32) -> (i32, i32) {
    %c0_i32 = arith.constant 0 : i32
    return %arg0, %arg2 : i32, i32
  }
  func.func @transform_1(%arg0: i32, %arg1: i32, %arg2: i32) -> (i32, i32) {
    %c0_i32 = arith.constant 0 : i32
    return %arg2, %arg1 : i32, i32
  }
  func.func @transform_2(%arg0: i32, %arg1: i32, %arg2: i32) -> (i32, i32) {
    %c0_i32 = arith.constant 0 : i32
    %c0_i32_0 = arith.constant 0 : i32
    return %c0_i32, %arg1 : i32, i32
  }
  func.func @transform_3(%arg0: i32, %arg1: i32, %arg2: i32) -> (i32, i32) {
    %c0_i32 = arith.constant 0 : i32
    return %arg0, %arg1 : i32, i32
  }
}

</mosaic_0001>

<llo_original>
// kernel: tpu_custom_call.1
$region0: #{tpu_custom_call.1}
  #allocation0 [shape = 'u32[]', space=smem, size = 0x4, offset = 0x4, fixed_abs, tag = 'smem constant byte address 0x4 - core index']
  #allocation1 [shape = 'u32[144,128]{1,0:T(1,128)}', space=vmem, size = 0x12000, scoped, tag = 'internal scratch']
  %s0 = inlined_call_operand.hbm [shape: f32[16,128], index: 0, kind: input, shape index: {}]
  %s1 = inlined_call_operand.hbm [shape: f32[128,128], index: 1, kind: input, shape index: {}]
  %s2 = inlined_call_operand.hbm [shape: f32[8,128], index: 2, kind: input, shape index: {}]
  %s3 = inlined_call_operand.hbm [shape: f32[16,128], index: 3, kind: output, shape index: {}]
  %s4 = sld [smem:[#allocation0]]
  $region34: #{tpu_custom_call.1} parent=0
    _
  %s6 = ssub.s32 1, %s4
  %s7 = scalar_select 0, %s6, %s4
  $region1: #{tpu_custom_call.1} parent=0
    #allocation2 [shape = 'u8[8192]{0}', space=vmem, size = 0x2000, scoped, tag = 'input window, operand 0, single buffered']
    #allocation3 [shape = 's32[1]{0}', space=sflag, size = 0x4, scoped, tag = 'scoped memory for tpu_custom_call.1']
    #allocation4 [shape = 's32[1]{0}', space=sflag, size = 0x4, scoped, tag = 'scoped memory for tpu_custom_call.1']
    #allocation5 [shape = 'u8[65536]{0}', space=vmem, size = 0x10000, scoped, tag = 'input window, operand 1, single buffered']
    #allocation6 [shape = 's32[1]{0}', space=sflag, size = 0x4, scoped, tag = 'scoped memory for tpu_custom_call.1']
    #allocation7 [shape = 'u8[4096]{0}', space=vmem, size = 0x1000, scoped, tag = 'input window, operand 2, single buffered']
    #allocation8 [shape = 'u8[8192]{0}', space=vmem, size = 0x2000, scoped, tag = 'output window, operand 0, single buffered']
    %8 = vsyncpa [#allocation3], 0
    %9 = vsyncpa [#allocation6], 0
    %10 = vsyncpa [#allocation4], 0
    // Predicated region
    $region2: #{tpu_custom_call.1} parent=1 // pred_check
      _
    $region3: #{tpu_custom_call.1} parent=1 // pred_check_branch
      %12 = sbr.rel (0) target = $region5
    $region4: #{tpu_custom_call.1} parent=1 // pred_region
      %s14 = ssub.s32 256, 256
      %15 = vsyncadd [#allocation3], %s14
      %s16 = sshll.u32 [#allocation2], 4
      %s17 = int_to_ptr.vmem [resolvable:$true] %s16
      %22 = dma.hbm_to_vmem [thread:$0]  %s0, 256, %s17, [#allocation3], 128, 128, 8
    $region5: #{tpu_custom_call.1} parent=1 // pred_fallthru
      _
    // Predicated region
    $region6: #{tpu_custom_call.1} parent=1 // pred_check
      _
    $region7: #{tpu_custom_call.1} parent=1 // pred_check_branch
      %24 = sbr.rel (0) target = $region9
    $region8: #{tpu_custom_call.1} parent=1 // pred_region
      %s26 = ssub.s32 2048, 2048
      %27 = vsyncadd [#allocation6], %s26
      %s28 = sshll.u32 [#allocation5], 4
      %s29 = int_to_ptr.vmem [resolvable:$true] %s28
      %34 = dma.hbm_to_vmem [thread:$0]  %s1, 2048, %s29, [#allocation6], 128, 128, 8
    $region9: #{tpu_custom_call.1} parent=1 // pred_fallthru
      _
    // Predicated region
    $region10: #{tpu_custom_call.1} parent=1 // pred_check
      _
    $region11: #{tpu_custom_call.1} parent=1 // pred_check_branch
      %36 = sbr.rel (0) target = $region13
    $region12: #{tpu_custom_call.1} parent=1 // pred_region
      %s38 = ssub.s32 128, 128
      %39 = vsyncadd [#allocation6], %s38
      %s41 = sshll.u32 [#allocation7], 4
      %s42 = int_to_ptr.vmem [resolvable:$true] %s41
      %44 = dma.hbm_to_vmem [thread:$0]  %s2, 128, %s42, [#allocation6]
    $region13: #{tpu_custom_call.1} parent=1 // pred_fallthru
      _
    // Predicated region
    $region14: #{tpu_custom_call.1} parent=1 // pred_check
      _
    $region15: #{tpu_custom_call.1} parent=1 // pred_check_branch
      %46 = sbr.rel (0) target = $region17
    $region16: #{tpu_custom_call.1} parent=1 // pred_region
      %47 = dma.done [#allocation3], 256
    $region17: #{tpu_custom_call.1} parent=1 // pred_fallthru
      _
    // Predicated region
    $region18: #{tpu_custom_call.1} parent=1 // pred_check
      _
    $region19: #{tpu_custom_call.1} parent=1 // pred_check_branch
      %49 = sbr.rel (0) target = $region21
    $region20: #{tpu_custom_call.1} parent=1 // pred_region
      %50 = dma.done [#allocation6], 2048
    $region21: #{tpu_custom_call.1} parent=1 // pred_fallthru
      _
    // Predicated region
    $region22: #{tpu_custom_call.1} parent=1 // pred_check
      _
    $region23: #{tpu_custom_call.1} parent=1 // pred_check_branch
      %52 = sbr.rel (0) target = $region25
    $region24: #{tpu_custom_call.1} parent=1 // pred_region
      %53 = dma.done [#allocation6], 128
    $region25: #{tpu_custom_call.1} parent=1 // pred_fallthru
      _
    %v54 = vld [vmem:[#allocation2] sm:$0xff]
    %v55 = vld [vmem:[#allocation2 + $0x8] sm:$0xff]
    %v56 = vld [vmem:[#allocation5] sm:$0xff]
    %v57 = vld [vmem:[#allocation5 + $0x8] sm:$0xff]
    %v58 = vld [vmem:[#allocation5 + $0x10] sm:$0xff]
    %v59 = vld [vmem:[#allocation5 + $0x18] sm:$0xff]
    %v60 = vld [vmem:[#allocation5 + $0x20] sm:$0xff]
    %v61 = vld [vmem:[#allocation5 + $0x28] sm:$0xff]
    %v62 = vld [vmem:[#allocation5 + $0x30] sm:$0xff]
    %v63 = vld [vmem:[#allocation5 + $0x38] sm:$0xff]
    %v64 = vld [vmem:[#allocation5 + $0x40] sm:$0xff]
    %v65 = vld [vmem:[#allocation5 + $0x48] sm:$0xff]
    %v66 = vld [vmem:[#allocation5 + $0x50] sm:$0xff]
    %v67 = vld [vmem:[#allocation5 + $0x58] sm:$0xff]
    %v68 = vld [vmem:[#allocation5 + $0x60] sm:$0xff]
    %v69 = vld [vmem:[#allocation5 + $0x68] sm:$0xff]
    %v70 = vld [vmem:[#allocation5 + $0x70] sm:$0xff]
    %v71 = vld [vmem:[#allocation5 + $0x78] sm:$0xff]
    %v72 = vld [vmem:[#allocation7] sm:$0xff]
    %v73 = vlaneseq
    %v74 = vshrl.u32 %v73, 7
    %v75 = vsub.s32 0, %v74
    %v76 = vrot.slane %v72, %v75
    %77 = vmatprep.subr.mxu0 0.0
    %78 = vmatpush1.msra.mxu0 %v71
    %79 = vmatprep.subr.mxu0 0.0
    %80 = vmatpush1.msra.mxu0 %v70
    %81 = vmatprep.subr.mxu0 0.0
    %82 = vmatpush1.msra.mxu0 %v69
    %83 = vmatprep.subr.mxu0 0.0
    %84 = vmatpush1.msra.mxu0 %v68
    %85 = vmatprep.subr.mxu0 0.0
    %86 = vmatpush1.msra.mxu0 %v67
    %87 = vmatprep.subr.mxu0 0.0
    %88 = vmatpush1.msra.mxu0 %v66
    %89 = vmatprep.subr.mxu0 0.0
    %90 = vmatpush1.msra.mxu0 %v65
    %91 = vmatprep.subr.mxu0 0.0
    %92 = vmatpush1.msra.mxu0 %v64
    %93 = vmatprep.subr.mxu0 0.0
    %94 = vmatpush1.msra.mxu0 %v63
    %95 = vmatprep.subr.mxu0 0.0
    %96 = vmatpush1.msra.mxu0 %v62
    %97 = vmatprep.subr.mxu0 0.0
    %98 = vmatpush1.msra.mxu0 %v61
    %99 = vmatprep.subr.mxu0 0.0
    %100 = vmatpush1.msra.mxu0 %v60
    %101 = vmatprep.subr.mxu0 0.0
    %102 = vmatpush1.msra.mxu0 %v59
    %103 = vmatprep.subr.mxu0 0.0
    %104 = vmatpush1.msra.mxu0 %v58
    %105 = vmatprep.subr.mxu0 0.0
    %106 = vmatpush1.msra.mxu0 %v57
    %107 = vmatprep.subr.mxu0 0.0
    %108 = vmatpush1.msra.mxu0 %v56
    %109 = vmatprep.subr.mxu0 0.0
    %110 = vmatpush2.msra.mxu0 0.0
    %111 = vmatprep.subr.mxu0 0.0
    %112 = vmatpush2.msra.mxu0 0.0
    %113 = vmatprep.subr.mxu0 0.0
    %114 = vmatpush2.msra.mxu0 0.0
    %115 = vmatprep.subr.mxu0 0.0
    %116 = vmatpush2.msra.mxu0 0.0
    %117 = vmatprep.subr.mxu0 0.0
    %118 = vmatpush2.msra.mxu0 0.0
    %119 = vmatprep.subr.mxu0 0.0
    %120 = vmatpush2.msra.mxu0 0.0
    %121 = vmatprep.subr.mxu0 0.0
    %122 = vmatpush2.msra.mxu0 0.0
    %123 = vmatprep.subr.mxu0 0.0
    %124 = vmatpush2.msra.mxu0 0.0
    %125 = vmatprep.subr.mxu0 0.0
    %126 = vmatpush2.msra.mxu0 0.0
    %127 = vmatprep.subr.mxu0 0.0
    %128 = vmatpush2.msra.mxu0 0.0
    %129 = vmatprep.subr.mxu0 0.0
    %130 = vmatpush2.msra.mxu0 0.0
    %131 = vmatprep.subr.mxu0 0.0
    %132 = vmatpush2.msra.mxu0 0.0
    %133 = vmatprep.subr.mxu0 0.0
    %134 = vmatpush2.msra.mxu0 0.0
    %135 = vmatprep.subr.mxu0 0.0
    %136 = vmatpush2.msra.mxu0 0.0
    %137 = vmatprep.subr.mxu0 0.0
    %138 = vmatpush2.msra.mxu0 0.0
    %139 = vmatprep.subr.mxu0 0.0
    %140 = vmatpush2.msra.mxu0 0.0
    %141 = vmatprep.mubr.f32.mxu0 0.0
    %142 = vmatmul.mubr.f32.gmra.mxu0 %v54
    %v143 = vpop.f32.mrf.mxu0
    %v144 = vadd.f32 %v76, %v143
    %v145 = vpop.f32.mrf.mxu0
    %146 = vmatprep.mubr.f32.mxu0 0.0
    %147 = vmatmul.mubr.f32.gmra.mxu0 %v55
    %v148 = vpop.f32.mrf.mxu0
    %v149 = vadd.f32 %v76, %v148
    %v150 = vpop.f32.mrf.mxu0
    %151 = vdwg.mxu0
    %v152 = vmax.f32 %v144, 0.0
    %v153 = vmax.f32 %v149, 0.0
    %154 = vadd.xlane.f32.xlu0 %v152
    %v155 = vpop.xlane.xlu0 %154
    %156 = vadd.xlane.f32.xlu0 %v153
    %v157 = vpop.xlane.xlu0 %156
    %v158 = vmul.f32 %v155, 0.03125
    %v159 = vmul.f32 %v157, 0.03125
    %v160 = vsub.f32 %v152, %v158
    %v161 = vsub.f32 %v153, %v159
    %v162 = vmul.f32 %v160, %v160
    %v163 = vmul.f32 %v161, %v161
    %164 = vadd.xlane.f32.xlu0 %v162
    %v165 = vpop.xlane.xlu0 %164
    %166 = vadd.xlane.f32.xlu0 %v163
    %v167 = vpop.xlane.xlu0 %166
    %v168 = vmul.f32 %v158, %v158
    %v169 = vmul.f32 %v159, %v159
    %v170 = vmul.f32 %v168, 96.0
    %v171 = vmul.f32 %v169, 96.0
    %v172 = vsub.f32 %v165, %v170
    %v173 = vsub.f32 %v167, %v171
    %v174 = vmul.f32 %v172, 0.03125
    %v175 = vmul.f32 %v173, 0.03125
    %v176 = vadd.f32 %v174, 1e-06
    %v177 = vadd.f32 %v175, 1e-06
    %v178 = vrsqrt.pop %v176
    %v179 = vrsqrt.pop %v177
    %v180 = vmul.f32 %v160, %v178
    %v181 = vmul.f32 %v161, %v179
    %v182 = vlaneseq
    %v183 = vshrl.u32 %v182, 7
    %v184 = vsub.s32 1, %v183
    %v185 = vrot.slane %v72, %v184
    %v186 = vmul.f32 %v180, %v185
    %v187 = vmul.f32 %v181, %v185
    %v188 = vlaneseq
    %v189 = vshrl.u32 %v188, 7
    %v190 = vsub.s32 2, %v189
    %v191 = vrot.slane %v72, %v190
    %v192 = vadd.f32 %v186, %v191
    %v193 = vadd.f32 %v187, %v191
    %194 = vst [vmem:[#allocation8] sm:$0xff] %v192
    %195 = vst [vmem:[#allocation8 + $0x8] sm:$0xff] %v193
    // Predicated region
    $region26: #{tpu_custom_call.1} parent=1 // pred_check
      _
    $region27: #{tpu_custom_call.1} parent=1 // pred_check_branch
      %197 = sbr.rel (0) target = $region29
    $region28: #{tpu_custom_call.1} parent=1 // pred_region
      %s199 = ssub.s32 256, 256
      %200 = vsyncadd [#allocation4], %s199
      %s201 = sshll.u32 [#allocation8], 4
      %s202 = int_to_ptr.vmem [resolvable:$true] %s201
      %207 = dma.vmem_to_hbm [thread:$0]  %s202, 256, %s3, [#allocation4], 128, 128, 8
    $region29: #{tpu_custom_call.1} parent=1 // pred_fallthru
      _
    // Predicated region
    $region30: #{tpu_custom_call.1} parent=1 // pred_check
      _
    $region31: #{tpu_custom_call.1} parent=1 // pred_check_branch
      %209 = sbr.rel (0) target = $region33
    $region32: #{tpu_custom_call.1} parent=1 // pred_region
      %210 = dma.done [#allocation4], 256
    $region33: #{tpu_custom_call.1} parent=1 // pred_fallthru
      _
    %211 = vsyncpa [#allocation3], 1
    %212 = vsyncpa [#allocation6], 1
    %213 = vsyncpa [#allocation4], 1

// kernel: tpu_custom_call.1
$region0: #{tpu_custom_call.1}
  #allocation0 [shape = 'u32[]', space=smem, size = 0x4, offset = 0x4, fixed_abs, tag = 'smem constant byte address 0x4 - core index']
  #allocation1 [shape = 'u32[144,128]{1,0:T(1,128)}', space=vmem, size = 0x12000, scoped, tag = 'internal scratch']
  %s0 = inlined_call_operand.hbm [shape: f32[16,128], index: 0, kind: input, shape index: {}]
  %s1 = inlined_call_operand.hbm [shape: f32[128,128], index: 1, kind: input, shape index: {}]
  %s2 = inlined_call_operand.hbm [shape: f32[8,128], index: 2, kind: input, shape index: {}]
  %s3 = inlined_call_operand.hbm [shape: f32[16,128], index: 3, kind: output, shape index: {}]
  %s4 = sld [smem:[#allocation0]]
  $region34: #{tpu_custom_call.1} parent=0
    _
  %s6 = ssub.s32 1, %s4
  %s7 = scalar_select 0, %s6, %s4
  $region1: #{tpu_custom_call.1} parent=0
    #allocation2 [shape = 'u8[8192]{0}', space=vmem, size = 0x2000, scoped, tag = 'input window, operand 0, single buffered']
    #allocation3 [shape = 's32[1]{0}', space=sflag, size = 0x4, scoped, tag = 'scoped memory for tpu_custom_call.1']
    #allocation4 [shape = 's32[1]{0}', space=sflag, size = 0x4, scoped, tag = 'scoped memory for tpu_custom_call.1']
    #allocation5 [shape = 'u8[65536]{0}', space=vmem, size = 0x10000, scoped, tag = 'input window, operand 1, single buffered']
    #allocation6 [shape = 's32[1]{0}', space=sflag, size = 0x4, scoped, tag = 'scoped memory for tpu_custom_call.1']
    #allocation7 [shape = 'u8[4096]{0}', space=vmem, size = 0x1000, scoped, tag = 'input window, operand 2, single buffered']
    #allocation8 [shape = 'u8[8192]{0}', space=vmem, size = 0x2000, scoped, tag = 'output window, operand 0, single buffered']
    %8 = vsyncpa [#allocation3], 0
    %9 = vsyncpa [#allocation6], 0
    %10 = vsyncpa [#allocation4], 0
    // Predicated region
    $region2: #{tpu_custom_call.1} parent=1 // pred_check
      _
    $region3: #{tpu_custom_call.1} parent=1 // pred_check_branch
      %12 = sbr.rel (0) target = $region5
    $region4: #{tpu_custom_call.1} parent=1 // pred_region
      %s14 = ssub.s32 256, 256
      %15 = vsyncadd [#allocation3], %s14
      %s16 = sshll.u32 [#allocation2], 4
      %s17 = int_to_ptr.vmem [resolvable:$true] %s16
      %22 = dma.hbm_to_vmem [thread:$0]  %s0, 256, %s17, [#allocation3], 128, 128, 8
    $region5: #{tpu_custom_call.1} parent=1 // pred_fallthru
      _
    // Predicated region
    $region6: #{tpu_custom_call.1} parent=1 // pred_check
      _
    $region7: #{tpu_custom_call.1} parent=1 // pred_check_branch
      %24 = sbr.rel (0) target = $region9
    $region8: #{tpu_custom_call.1} parent=1 // pred_region
      %s26 = ssub.s32 2048, 2048
      %27 = vsyncadd [#allocation6], %s26
      %s28 = sshll.u32 [#allocation5], 4
      %s29 = int_to_ptr.vmem [resolvable:$true] %s28
      %34 = dma.hbm_to_vmem [thread:$0]  %s1, 2048, %s29, [#allocation6], 128, 128, 8
    $region9: #{tpu_custom_call.1} parent=1 // pred_fallthru
      _
    // Predicated region
    $region10: #{tpu_custom_call.1} parent=1 // pred_check
      _
    $region11: #{tpu_custom_call.1} parent=1 // pred_check_branch
      %36 = sbr.rel (0) target = $region13
    $region12: #{tpu_custom_call.1} parent=1 // pred_region
      %s38 = ssub.s32 128, 128
      %39 = vsyncadd [#allocation6], %s38
      %s41 = sshll.u32 [#allocation7], 4
      %s42 = int_to_ptr.vmem [resolvable:$true] %s41
      %44 = dma.hbm_to_vmem [thread:$0]  %s2, 128, %s42, [#allocation6]
    $region13: #{tpu_custom_call.1} parent=1 // pred_fallthru
      _
    // Predicated region
    $region14: #{tpu_custom_call.1} parent=1 // pred_check
      _
    $region15: #{tpu_custom_call.1} parent=1 // pred_check_branch
      %46 = sbr.rel (0) target = $region17
    $region16: #{tpu_custom_call.1} parent=1 // pred_region
      %47 = dma.done [#allocation3], 256
    $region17: #{tpu_custom_call.1} parent=1 // pred_fallthru
      _
    // Predicated region
    $region18: #{tpu_custom_call.1} parent=1 // pred_check
      _
    $region19: #{tpu_custom_call.1} parent=1 // pred_check_branch
      %49 = sbr.rel (0) target = $region21
    $region20: #{tpu_custom_call.1} parent=1 // pred_region
      %50 = dma.done [#allocation6], 2048
    $region21: #{tpu_custom_call.1} parent=1 // pred_fallthru
      _
    // Predicated region
    $region22: #{tpu_custom_call.1} parent=1 // pred_check
      _
    $region23: #{tpu_custom_call.1} parent=1 // pred_check_branch
      %52 = sbr.rel (0) target = $region25
    $region24: #{tpu_custom_call.1} parent=1 // pred_region
      %53 = dma.done [#allocation6], 128
    $region25: #{tpu_custom_call.1} parent=1 // pred_fallthru
      _
    %v54 = vld [vmem:[#allocation2] sm:$0xff]
    %v55 = vld [vmem:[#allocation2 + $0x8] sm:$0xff]
    %v56 = vld [vmem:[#allocation5] sm:$0xff]
    %v57 = vld [vmem:[#allocation5 + $0x8] sm:$0xff]
    %v58 = vld [vmem:[#allocation5 + $0x10] sm:$0xff]
    %v59 = vld [vmem:[#allocation5 + $0x18] sm:$0xff]
    %v60 = vld [vmem:[#allocation5 + $0x20] sm:$0xff]
    %v61 = vld [vmem:[#allocation5 + $0x28] sm:$0xff]
    %v62 = vld [vmem:[#allocation5 + $0x30] sm:$0xff]
    %v63 = vld [vmem:[#allocation5 + $0x38] sm:$0xff]
    %v64 = vld [vmem:[#allocation5 + $0x40] sm:$0xff]
    %v65 = vld [vmem:[#allocation5 + $0x48] sm:$0xff]
    %v66 = vld [vmem:[#allocation5 + $0x50] sm:$0xff]
    %v67 = vld [vmem:[#allocation5 + $0x58] sm:$0xff]
    %v68 = vld [vmem:[#allocation5 + $0x60] sm:$0xff]
    %v69 = vld [vmem:[#allocation5 + $0x68] sm:$0xff]
    %v70 = vld [vmem:[#allocation5 + $0x70] sm:$0xff]
    %v71 = vld [vmem:[#allocation5 + $0x78] sm:$0xff]
    %v72 = vld [vmem:[#allocation7] sm:$0xff]
    %v73 = vlaneseq
    %v74 = vshrl.u32 %v73, 7
    %v75 = vsub.s32 0, %v74
    %v76 = vrot.slane %v72, %v75
    %77 = vmatprep.subr.mxu0 0.0
    %78 = vmatpush1.msra.mxu0 %v71
    %79 = vmatprep.subr.mxu0 0.0
    %80 = vmatpush1.msra.mxu0 %v70
    %81 = vmatprep.subr.mxu0 0.0
    %82 = vmatpush1.msra.mxu0 %v69
    %83 = vmatprep.subr.mxu0 0.0
    %84 = vmatpush1.msra.mxu0 %v68
    %85 = vmatprep.subr.mxu0 0.0
    %86 = vmatpush1.msra.mxu0 %v67
    %87 = vmatprep.subr.mxu0 0.0
    %88 = vmatpush1.msra.mxu0 %v66
    %89 = vmatprep.subr.mxu0 0.0
    %90 = vmatpush1.msra.mxu0 %v65
    %91 = vmatprep.subr.mxu0 0.0
    %92 = vmatpush1.msra.mxu0 %v64
    %93 = vmatprep.subr.mxu0 0.0
    %94 = vmatpush1.msra.mxu0 %v63
    %95 = vmatprep.subr.mxu0 0.0
    %96 = vmatpush1.msra.mxu0 %v62
    %97 = vmatprep.subr.mxu0 0.0
    %98 = vmatpush1.msra.mxu0 %v61
    %99 = vmatprep.subr.mxu0 0.0
    %100 = vmatpush1.msra.mxu0 %v60
    %101 = vmatprep.subr.mxu0 0.0
    %102 = vmatpush1.msra.mxu0 %v59
    %103 = vmatprep.subr.mxu0 0.0
    %104 = vmatpush1.msra.mxu0 %v58
    %105 = vmatprep.subr.mxu0 0.0
    %106 = vmatpush1.msra.mxu0 %v57
    %107 = vmatprep.subr.mxu0 0.0
    %108 = vmatpush1.msra.mxu0 %v56
    %109 = vmatprep.subr.mxu0 0.0
    %110 = vmatpush2.msra.mxu0 0.0
    %111 = vmatprep.subr.mxu0 0.0
    %112 = vmatpush2.msra.mxu0 0.0
    %113 = vmatprep.subr.mxu0 0.0
    %114 = vmatpush2.msra.mxu0 0.0
    %115 = vmatprep.subr.mxu0 0.0
    %116 = vmatpush2.msra.mxu0 0.0
    %117 = vmatprep.subr.mxu0 0.0
    %118 = vmatpush2.msra.mxu0 0.0
    %119 = vmatprep.subr.mxu0 0.0
    %120 = vmatpush2.msra.mxu0 0.0
    %121 = vmatprep.subr.mxu0 0.0
    %122 = vmatpush2.msra.mxu0 0.0
    %123 = vmatprep.subr.mxu0 0.0
    %124 = vmatpush2.msra.mxu0 0.0
    %125 = vmatprep.subr.mxu0 0.0
    %126 = vmatpush2.msra.mxu0 0.0
    %127 = vmatprep.subr.mxu0 0.0
    %128 = vmatpush2.msra.mxu0 0.0
    %129 = vmatprep.subr.mxu0 0.0
    %130 = vmatpush2.msra.mxu0 0.0
    %131 = vmatprep.subr.mxu0 0.0
    %132 = vmatpush2.msra.mxu0 0.0
    %133 = vmatprep.subr.mxu0 0.0
    %134 = vmatpush2.msra.mxu0 0.0
    %135 = vmatprep.subr.mxu0 0.0
    %136 = vmatpush2.msra.mxu0 0.0
    %137 = vmatprep.subr.mxu0 0.0
    %138 = vmatpush2.msra.mxu0 0.0
    %139 = vmatprep.subr.mxu0 0.0
    %140 = vmatpush2.msra.mxu0 0.0
    %141 = vmatprep.mubr.f32.mxu0 0.0
    %142 = vmatmul.mubr.f32.gmra.mxu0 %v54
    %v143 = vpop.f32.mrf.mxu0
    %v144 = vadd.f32 %v76, %v143
    %v145 = vpop.f32.mrf.mxu0
    %146 = vmatprep.mubr.f32.mxu0 0.0
    %147 = vmatmul.mubr.f32.gmra.mxu0 %v55
    %v148 = vpop.f32.mrf.mxu0
    %v149 = vadd.f32 %v76, %v148
    %v150 = vpop.f32.mrf.mxu0
    %151 = vdwg.mxu0
    %v152 = vmax.f32 %v144, 0.0
    %v153 = vmax.f32 %v149, 0.0
    %154 = vadd.xlane.f32.xlu0 %v152
    %v155 = vpop.xlane.xlu0 %154
    %156 = vadd.xlane.f32.xlu0 %v153
    %v157 = vpop.xlane.xlu0 %156
    %v158 = vmul.f32 %v155, 0.03125
    %v159 = vmul.f32 %v157, 0.03125
    %v160 = vsub.f32 %v152, %v158
    %v161 = vsub.f32 %v153, %v159
    %v162 = vmul.f32 %v160, %v160
    %v163 = vmul.f32 %v161, %v161
    %164 = vadd.xlane.f32.xlu0 %v162
    %v165 = vpop.xlane.xlu0 %164
    %166 = vadd.xlane.f32.xlu0 %v163
    %v167 = vpop.xlane.xlu0 %166
    %v168 = vmul.f32 %v158, %v158
    %v169 = vmul.f32 %v159, %v159
    %v170 = vmul.f32 %v168, 96.0
    %v171 = vmul.f32 %v169, 96.0
    %v172 = vsub.f32 %v165, %v170
    %v173 = vsub.f32 %v167, %v171
    %v174 = vmul.f32 %v172, 0.03125
    %v175 = vmul.f32 %v173, 0.03125
    %v176 = vadd.f32 %v174, 1e-06
    %v177 = vadd.f32 %v175, 1e-06
    %v178 = vrsqrt.pop %v176
    %v179 = vrsqrt.pop %v177
    %v180 = vmul.f32 %v160, %v178
    %v181 = vmul.f32 %v161, %v179
    %v182 = vlaneseq
    %v183 = vshrl.u32 %v182, 7
    %v184 = vsub.s32 1, %v183
    %v185 = vrot.slane %v72, %v184
    %v186 = vmul.f32 %v180, %v185
    %v187 = vmul.f32 %v181, %v185
    %v188 = vlaneseq
    %v189 = vshrl.u32 %v188, 7
    %v190 = vsub.s32 2, %v189
    %v191 = vrot.slane %v72, %v190
    %v192 = vadd.f32 %v186, %v191
    %v193 = vadd.f32 %v187, %v191
    %194 = vst [vmem:[#allocation8] sm:$0xff] %v192
    %195 = vst [vmem:[#allocation8 + $0x8] sm:$0xff] %v193
    // Predicated region
    $region26: #{tpu_custom_call.1} parent=1 // pred_check
      _
    $region27: #{tpu_custom_call.1} parent=1 // pred_check_branch
      %197 = sbr.rel (0) target = $region29
    $region28: #{tpu_custom_call.1} parent=1 // pred_region
      %s199 = ssub.s32 256, 256
      %200 = vsyncadd [#allocation4], %s199
      %s201 = sshll.u32 [#allocation8], 4
      %s202 = int_to_ptr.vmem [resolvable:$true] %s201
      %207 = dma.vmem_to_hbm [thread:$0]  %s202, 256, %s3, [#allocation4], 128, 128, 8
    $region29: #{tpu_custom_call.1} parent=1 // pred_fallthru
      _
    // Predicated region
    $region30: #{tpu_custom_call.1} parent=1 // pred_check
      _
    $region31: #{tpu_custom_call.1} parent=1 // pred_check_branch
      %209 = sbr.rel (0) target = $region33
    $region32: #{tpu_custom_call.1} parent=1 // pred_region
      %210 = dma.done [#allocation4], 256
    $region33: #{tpu_custom_call.1} parent=1 // pred_fallthru
      _
    %211 = vsyncpa [#allocation3], 1
    %212 = vsyncpa [#allocation6], 1
    %213 = vsyncpa [#allocation4], 1

</llo_original>
